<compile_context>
chip_gen: v5e
topology: v5e:2x2
jax: 0.10.0
libtpu: 0.0.40
codegen_flags: <defaults>
</compile_context>

<pallas_src>
import functools

import jax
import jax.numpy as jnp
from jax.experimental import pallas as pl
from jax.experimental.pallas import tpu as pltpu


# --------------------------------------------------------------------------
# Kernel: whole MultiheadAttention forward in one invocation (no grid).
# --------------------------------------------------------------------------
def _mha_kernel(q_ref, k_ref, v_ref,
                wq_ref, bq_ref, wk_ref, bk_ref, wv_ref, bv_ref, wf_ref, bf_ref,
                out_ref, attn_ref,
                *, batch, len_q, len_k, n_heads, head_dim):
    inv_scale = 1.0 / float(head_dim) ** 0.5

    # ---- input projections: lane-dense 2D matmuls on (B*L, H) ----
    Q = jnp.dot(q_ref[...], wq_ref[...], preferred_element_type=jnp.float32) + bq_ref[...]
    K = jnp.dot(k_ref[...], wk_ref[...], preferred_element_type=jnp.float32) + bk_ref[...]
    V = jnp.dot(v_ref[...], wv_ref[...], preferred_element_type=jnp.float32) + bv_ref[...]

    # ---- per-head scaled dot-product attention (static unroll over heads) ----
    ctx_parts = []
    for h in range(n_heads):
        lo, hi = h * head_dim, (h + 1) * head_dim
        Qh = Q[:, lo:hi].reshape(batch, len_q, head_dim)
        Kh = K[:, lo:hi].reshape(batch, len_k, head_dim)
        Vh = V[:, lo:hi].reshape(batch, len_k, head_dim)

        S = jnp.einsum('bid,bjd->bij', Qh, Kh,
                       preferred_element_type=jnp.float32) * inv_scale
        # TODO(synk): the optional `mask` argument of the reference forward is not
        # implemented here (the eval path exercised uses mask=None).
        m = jnp.max(S, axis=-1, keepdims=True)
        e = jnp.exp(S - m)
        A = e * pl.reciprocal(jnp.sum(e, axis=-1, keepdims=True), approx=True)
        attn_ref[h] = A                                   # (B, Lq, Lk)
        # dropout = identity in eval mode.
        ctx_h = jnp.einsum('bij,bjd->bid', A, Vh,
                           preferred_element_type=jnp.float32)
        ctx_parts.append(ctx_h.reshape(batch * len_q, head_dim))

    # ---- merge heads + output projection ----
    ctx = jnp.concatenate(ctx_parts, axis=-1)             # (B*Lq, H)
    out_ref[...] = jnp.dot(ctx, wf_ref[...],
                           preferred_element_type=jnp.float32) + bf_ref[...]


# --------------------------------------------------------------------------
# Wrapper
# --------------------------------------------------------------------------
def multihead_attention(query, key, value, params, *, n_heads):
    """query: (B, Lq, H); key/value: (B, Lk, H). Returns (x, attention)."""
    B, Lq, H = query.shape
    Lk = key.shape[1]
    assert H % n_heads == 0
    Dh = H // n_heads

    # Flatten at the pallas_call boundary (the input DMA establishes the layout;
    # no in-kernel relayout needed).
    q2 = query.reshape(B * Lq, H)
    k2 = key.reshape(B * Lk, H)
    v2 = value.reshape(B * Lk, H)

    vspec = pl.BlockSpec(memory_space=pltpu.MemorySpace.VMEM)
    kernel = functools.partial(_mha_kernel, batch=B, len_q=Lq, len_k=Lk,
                               n_heads=n_heads, head_dim=Dh)
    out2, attn_h = pl.pallas_call(
        kernel,
        out_shape=(
            jax.ShapeDtypeStruct((B * Lq, H), jnp.float32),
            jax.ShapeDtypeStruct((n_heads, B, Lq, Lk), jnp.float32),
        ),
        in_specs=[vspec] * 11,
        out_specs=(vspec, vspec),
    )(q2, k2, v2,
      params["wq"], params["bq"], params["wk"], params["bk"],
      params["wv"], params["bv"], params["wf"], params["bf"])

    x = out2.reshape(B, Lq, H)
    attention = jnp.transpose(attn_h, (1, 0, 2, 3))       # torch layout (B, nH, Lq, Lk)
    return x, attention


# --------------------------------------------------------------------------
# Parameter init (torch-Linear-like uniform; weights stored (in, out))
# --------------------------------------------------------------------------
def init_params(key, hid_dim):
    def lin(k, fan_in, fan_out):
        kw, kb = jax.random.split(k)
        bound = 1.0 / (fan_in ** 0.5)
        w = jax.random.uniform(kw, (fan_in, fan_out), jnp.float32, -bound, bound)
        b = jax.random.uniform(kb, (1, fan_out), jnp.float32, -bound, bound)
        return w, b

    kq, kk, kv, kf = jax.random.split(key, 4)
    p = {}
    p["wq"], p["bq"] = lin(kq, hid_dim, hid_dim)
    p["wk"], p["bk"] = lin(kk, hid_dim, hid_dim)
    p["wv"], p["bv"] = lin(kv, hid_dim, hid_dim)
    p["wf"], p["bf"] = lin(kf, hid_dim, hid_dim)
    return p


# --------------------------------------------------------------------------
# Plain-JAX reference (mirrors the torch forward) for a sanity check
# --------------------------------------------------------------------------
def _reference(query, key, value, params, n_heads):
    B, Lq, H = query.shape
    Lk = key.shape[1]
    Dh = H // n_heads
    Q = query @ params["wq"] + params["bq"]
    K = key @ params["wk"] + params["bk"]
    V = value @ params["wv"] + params["bv"]
    Q = Q.reshape(B, Lq, n_heads, Dh).transpose(0, 2, 1, 3)
    K = K.reshape(B, Lk, n_heads, Dh).transpose(0, 2, 1, 3)
    V = V.reshape(B, Lk, n_heads, Dh).transpose(0, 2, 1, 3)
    S = jnp.einsum('bhid,bhjd->bhij', Q, K) / (Dh ** 0.5)
    A = jax.nn.softmax(S, axis=-1)
    ctx = jnp.einsum('bhij,bhjd->bhid', A, V)
    ctx = ctx.transpose(0, 2, 1, 3).reshape(B, Lq, H)
    x = ctx @ params["wf"] + params["bf"]
    return x, A


if __name__ == "__main__":
    B, L, H, NH = 2, 8, 32, 4            # batch=2, seq=8, hid_dim=32, n_heads=4

    key = jax.random.PRNGKey(0)
    kq, kk, kv, kp = jax.random.split(key, 4)
    q = jax.random.normal(kq, (B, L, H), dtype=jnp.float32)
    k = jax.random.normal(kk, (B, L, H), dtype=jnp.float32)
    v = jax.random.normal(kv, (B, L, H), dtype=jnp.float32)
    params = init_params(kp, H)

    fwd = jax.jit(functools.partial(multihead_attention, n_heads=NH))
    x, attn = fwd(q, k, v, params)
    jax.block_until_ready((x, attn))

    assert x.shape == (B, L, H)
    assert attn.shape == (B, NH, L, L)

    # numerical sanity check against the plain-JAX reference
    x_ref, attn_ref = _reference(q, k, v, params, NH)
    assert jnp.allclose(x, x_ref, atol=5e-2, rtol=5e-2)
    assert jnp.allclose(attn, attn_ref, atol=5e-2, rtol=5e-2)

    print("KERNEL_OK")
</pallas_src>

<mosaic_0001>
module attributes {stable_mosaic.version = 11 : i64} {
  func.func @_mha_kernel(%arg0: memref<16x32xf32, #tpu.memory_space<vmem>>, %arg1: memref<16x32xf32, #tpu.memory_space<vmem>>, %arg2: memref<16x32xf32, #tpu.memory_space<vmem>>, %arg3: memref<32x32xf32, #tpu.memory_space<vmem>>, %arg4: memref<1x32xf32, #tpu.memory_space<vmem>>, %arg5: memref<32x32xf32, #tpu.memory_space<vmem>>, %arg6: memref<1x32xf32, #tpu.memory_space<vmem>>, %arg7: memref<32x32xf32, #tpu.memory_space<vmem>>, %arg8: memref<1x32xf32, #tpu.memory_space<vmem>>, %arg9: memref<32x32xf32, #tpu.memory_space<vmem>>, %arg10: memref<1x32xf32, #tpu.memory_space<vmem>>, %arg11: memref<16x32xf32, #tpu.memory_space<vmem>>, %arg12: memref<4x2x8x8xf32, #tpu.memory_space<vmem>>) attributes {dimension_semantics = [], scalar_prefetch = 0 : i64, scratch_operands = 0 : i64, tpu.core_type = #tpu.core_type<tc>} {
    %c0 = arith.constant 0 : index
    %c0_0 = arith.constant 0 : index
    %0 = vector.load %arg0[%c0, %c0_0] : memref<16x32xf32, #tpu.memory_space<vmem>>, vector<16x32xf32>
    %c0_1 = arith.constant 0 : index
    %c0_2 = arith.constant 0 : index
    %1 = vector.load %arg3[%c0_1, %c0_2] : memref<32x32xf32, #tpu.memory_space<vmem>>, vector<32x32xf32>
    %cst = arith.constant dense<0.000000e+00> : vector<16x32xf32>
    %2 = tpu.matmul %0, %1, %cst {dimension_numbers = #tpu.dot_dimension_numbers<[1], [0], [0], [1], [0, 0, 1, 1], [], []>} : vector<16x32xf32>, vector<32x32xf32>, vector<16x32xf32> -> vector<16x32xf32>
    %c0_3 = arith.constant 0 : index
    %c0_4 = arith.constant 0 : index
    %3 = vector.load %arg4[%c0_3, %c0_4] : memref<1x32xf32, #tpu.memory_space<vmem>>, vector<1x32xf32>
    %4 = vector.broadcast %3 : vector<1x32xf32> to vector<16x32xf32>
    %5 = arith.addf %2, %4 : vector<16x32xf32>
    %c0_5 = arith.constant 0 : index
    %c0_6 = arith.constant 0 : index
    %6 = vector.load %arg1[%c0_5, %c0_6] : memref<16x32xf32, #tpu.memory_space<vmem>>, vector<16x32xf32>
    %c0_7 = arith.constant 0 : index
    %c0_8 = arith.constant 0 : index
    %7 = vector.load %arg5[%c0_7, %c0_8] : memref<32x32xf32, #tpu.memory_space<vmem>>, vector<32x32xf32>
    %cst_9 = arith.constant dense<0.000000e+00> : vector<16x32xf32>
    %8 = tpu.matmul %6, %7, %cst_9 {dimension_numbers = #tpu.dot_dimension_numbers<[1], [0], [0], [1], [0, 0, 1, 1], [], []>} : vector<16x32xf32>, vector<32x32xf32>, vector<16x32xf32> -> vector<16x32xf32>
    %c0_10 = arith.constant 0 : index
    %c0_11 = arith.constant 0 : index
    %9 = vector.load %arg6[%c0_10, %c0_11] : memref<1x32xf32, #tpu.memory_space<vmem>>, vector<1x32xf32>
    %10 = vector.broadcast %9 : vector<1x32xf32> to vector<16x32xf32>
    %11 = arith.addf %8, %10 : vector<16x32xf32>
    %c0_12 = arith.constant 0 : index
    %c0_13 = arith.constant 0 : index
    %12 = vector.load %arg2[%c0_12, %c0_13] : memref<16x32xf32, #tpu.memory_space<vmem>>, vector<16x32xf32>
    %c0_14 = arith.constant 0 : index
    %c0_15 = arith.constant 0 : index
    %13 = vector.load %arg7[%c0_14, %c0_15] : memref<32x32xf32, #tpu.memory_space<vmem>>, vector<32x32xf32>
    %cst_16 = arith.constant dense<0.000000e+00> : vector<16x32xf32>
    %14 = tpu.matmul %12, %13, %cst_16 {dimension_numbers = #tpu.dot_dimension_numbers<[1], [0], [0], [1], [0, 0, 1, 1], [], []>} : vector<16x32xf32>, vector<32x32xf32>, vector<16x32xf32> -> vector<16x32xf32>
    %c0_17 = arith.constant 0 : index
    %c0_18 = arith.constant 0 : index
    %15 = vector.load %arg8[%c0_17, %c0_18] : memref<1x32xf32, #tpu.memory_space<vmem>>, vector<1x32xf32>
    %16 = vector.broadcast %15 : vector<1x32xf32> to vector<16x32xf32>
    %17 = arith.addf %14, %16 : vector<16x32xf32>
    %18 = vector.extract_strided_slice %5 {offsets = [0, 0], sizes = [16, 8], strides = [1, 1]} : vector<16x32xf32> to vector<16x8xf32>
    %19 = vector.shape_cast %18 : vector<16x8xf32> to vector<2x8x8xf32>
    %20 = vector.extract_strided_slice %11 {offsets = [0, 0], sizes = [16, 8], strides = [1, 1]} : vector<16x32xf32> to vector<16x8xf32>
    %21 = vector.shape_cast %20 : vector<16x8xf32> to vector<2x8x8xf32>
    %22 = vector.extract_strided_slice %17 {offsets = [0, 0], sizes = [16, 8], strides = [1, 1]} : vector<16x32xf32> to vector<16x8xf32>
    %23 = vector.shape_cast %22 : vector<16x8xf32> to vector<2x8x8xf32>
    "tpu.trace_start"() <{level = 10 : i32, message = "bid,bjd->bij"}> : () -> ()
    %cst_19 = arith.constant dense<0.000000e+00> : vector<2x8x8xf32>
    %24 = tpu.matmul %19, %21, %cst_19 {dimension_numbers = #tpu.dot_dimension_numbers<[2], [2], [1], [1], [0, 0, 0, 1, 1, 1], [0], [0]>} : vector<2x8x8xf32>, vector<2x8x8xf32>, vector<2x8x8xf32> -> vector<2x8x8xf32>
    "tpu.trace_stop"() : () -> ()
    %cst_20 = arith.constant 0.353553385 : f32
    %25 = vector.broadcast %cst_20 : f32 to vector<2x8x8xf32>
    %26 = arith.mulf %24, %25 : vector<2x8x8xf32>
    %cst_21 = arith.constant dense<0xFF800000> : vector<2x8xf32>
    %27 = vector.multi_reduction <maximumf>, %26, %cst_21 [2] : vector<2x8x8xf32> to vector<2x8xf32>
    %28 = vector.shape_cast %27 : vector<2x8xf32> to vector<2x8x1xf32>
    %29 = vector.broadcast %28 : vector<2x8x1xf32> to vector<2x8x8xf32>
    %30 = arith.subf %26, %29 : vector<2x8x8xf32>
    %31 = math.exp %30 : vector<2x8x8xf32>
    %cst_22 = arith.constant dense<0.000000e+00> : vector<2x8xf32>
    %32 = vector.multi_reduction <add>, %31, %cst_22 [2] : vector<2x8x8xf32> to vector<2x8xf32>
    %33 = vector.shape_cast %32 : vector<2x8xf32> to vector<2x8x1xf32>
    %34 = tpu.reciprocal %33 {approx = true} : vector<2x8x1xf32> -> vector<2x8x1xf32>
    %35 = vector.broadcast %34 : vector<2x8x1xf32> to vector<2x8x8xf32>
    %36 = arith.mulf %31, %35 : vector<2x8x8xf32>
    %c0_23 = arith.constant 0 : index
    %c0_24 = arith.constant 0 : index
    %c0_25 = arith.constant 0 : index
    %c0_26 = arith.constant 0 : index
    %37 = vector.load %arg12[%c0_23, %c0_24, %c0_25, %c0_26] : memref<4x2x8x8xf32, #tpu.memory_space<vmem>>, vector<1x2x8x8xf32>
    %38 = vector.shape_cast %37 : vector<1x2x8x8xf32> to vector<2x8x8xf32>
    %39 = vector.shape_cast %36 : vector<2x8x8xf32> to vector<1x2x8x8xf32>
    tpu.vector_store %arg12[%c0_23, %c0_24, %c0_25, %c0_26], %39 {strides = array<i32>} : memref<4x2x8x8xf32, #tpu.memory_space<vmem>>, vector<1x2x8x8xf32>,
    "tpu.trace_start"() <{level = 10 : i32, message = "bij,bjd->bid"}> : () -> ()
    %cst_27 = arith.constant dense<0.000000e+00> : vector<2x8x8xf32>
    %40 = tpu.matmul %36, %23, %cst_27 {dimension_numbers = #tpu.dot_dimension_numbers<[2], [1], [1], [2], [0, 0, 0, 1, 1, 2], [0], [0]>} : vector<2x8x8xf32>, vector<2x8x8xf32>, vector<2x8x8xf32> -> vector<2x8x8xf32>
    "tpu.trace_stop"() : () -> ()
    %41 = vector.shape_cast %40 : vector<2x8x8xf32> to vector<16x8xf32>
    %42 = vector.extract_strided_slice %5 {offsets = [0, 8], sizes = [16, 8], strides = [1, 1]} : vector<16x32xf32> to vector<16x8xf32>
    %43 = vector.shape_cast %42 : vector<16x8xf32> to vector<2x8x8xf32>
    %44 = vector.extract_strided_slice %11 {offsets = [0, 8], sizes = [16, 8], strides = [1, 1]} : vector<16x32xf32> to vector<16x8xf32>
    %45 = vector.shape_cast %44 : vector<16x8xf32> to vector<2x8x8xf32>
    %46 = vector.extract_strided_slice %17 {offsets = [0, 8], sizes = [16, 8], strides = [1, 1]} : vector<16x32xf32> to vector<16x8xf32>
    %47 = vector.shape_cast %46 : vector<16x8xf32> to vector<2x8x8xf32>
    "tpu.trace_start"() <{level = 10 : i32, message = "bid,bjd->bij"}> : () -> ()
    %cst_28 = arith.constant dense<0.000000e+00> : vector<2x8x8xf32>
    %48 = tpu.matmul %43, %45, %cst_28 {dimension_numbers = #tpu.dot_dimension_numbers<[2], [2], [1], [1], [0, 0, 0, 1, 1, 1], [0], [0]>} : vector<2x8x8xf32>, vector<2x8x8xf32>, vector<2x8x8xf32> -> vector<2x8x8xf32>
    "tpu.trace_stop"() : () -> ()
    %cst_29 = arith.constant 0.353553385 : f32
    %49 = vector.broadcast %cst_29 : f32 to vector<2x8x8xf32>
    %50 = arith.mulf %48, %49 : vector<2x8x8xf32>
    %cst_30 = arith.constant dense<0xFF800000> : vector<2x8xf32>
    %51 = vector.multi_reduction <maximumf>, %50, %cst_30 [2] : vector<2x8x8xf32> to vector<2x8xf32>
    %52 = vector.shape_cast %51 : vector<2x8xf32> to vector<2x8x1xf32>
    %53 = vector.broadcast %52 : vector<2x8x1xf32> to vector<2x8x8xf32>
    %54 = arith.subf %50, %53 : vector<2x8x8xf32>
    %55 = math.exp %54 : vector<2x8x8xf32>
    %cst_31 = arith.constant dense<0.000000e+00> : vector<2x8xf32>
    %56 = vector.multi_reduction <add>, %55, %cst_31 [2] : vector<2x8x8xf32> to vector<2x8xf32>
    %57 = vector.shape_cast %56 : vector<2x8xf32> to vector<2x8x1xf32>
    %58 = tpu.reciprocal %57 {approx = true} : vector<2x8x1xf32> -> vector<2x8x1xf32>
    %59 = vector.broadcast %58 : vector<2x8x1xf32> to vector<2x8x8xf32>
    %60 = arith.mulf %55, %59 : vector<2x8x8xf32>
    %c1 = arith.constant 1 : index
    %c0_32 = arith.constant 0 : index
    %c0_33 = arith.constant 0 : index
    %c0_34 = arith.constant 0 : index
    %61 = vector.load %arg12[%c1, %c0_32, %c0_33, %c0_34] : memref<4x2x8x8xf32, #tpu.memory_space<vmem>>, vector<1x2x8x8xf32>
    %62 = vector.shape_cast %61 : vector<1x2x8x8xf32> to vector<2x8x8xf32>
    %63 = vector.shape_cast %60 : vector<2x8x8xf32> to vector<1x2x8x8xf32>
    tpu.vector_store %arg12[%c1, %c0_32, %c0_33, %c0_34], %63 {strides = array<i32>} : memref<4x2x8x8xf32, #tpu.memory_space<vmem>>, vector<1x2x8x8xf32>,
    "tpu.trace_start"() <{level = 10 : i32, message = "bij,bjd->bid"}> : () -> ()
    %cst_35 = arith.constant dense<0.000000e+00> : vector<2x8x8xf32>
    %64 = tpu.matmul %60, %47, %cst_35 {dimension_numbers = #tpu.dot_dimension_numbers<[2], [1], [1], [2], [0, 0, 0, 1, 1, 2], [0], [0]>} : vector<2x8x8xf32>, vector<2x8x8xf32>, vector<2x8x8xf32> -> vector<2x8x8xf32>
    "tpu.trace_stop"() : () -> ()
    %65 = vector.shape_cast %64 : vector<2x8x8xf32> to vector<16x8xf32>
    %66 = vector.extract_strided_slice %5 {offsets = [0, 16], sizes = [16, 8], strides = [1, 1]} : vector<16x32xf32> to vector<16x8xf32>
    %67 = vector.shape_cast %66 : vector<16x8xf32> to vector<2x8x8xf32>
    %68 = vector.extract_strided_slice %11 {offsets = [0, 16], sizes = [16, 8], strides = [1, 1]} : vector<16x32xf32> to vector<16x8xf32>
    %69 = vector.shape_cast %68 : vector<16x8xf32> to vector<2x8x8xf32>
    %70 = vector.extract_strided_slice %17 {offsets = [0, 16], sizes = [16, 8], strides = [1, 1]} : vector<16x32xf32> to vector<16x8xf32>
    %71 = vector.shape_cast %70 : vector<16x8xf32> to vector<2x8x8xf32>
    "tpu.trace_start"() <{level = 10 : i32, message = "bid,bjd->bij"}> : () -> ()
    %cst_36 = arith.constant dense<0.000000e+00> : vector<2x8x8xf32>
    %72 = tpu.matmul %67, %69, %cst_36 {dimension_numbers = #tpu.dot_dimension_numbers<[2], [2], [1], [1], [0, 0, 0, 1, 1, 1], [0], [0]>} : vector<2x8x8xf32>, vector<2x8x8xf32>, vector<2x8x8xf32> -> vector<2x8x8xf32>
    "tpu.trace_stop"() : () -> ()
    %cst_37 = arith.constant 0.353553385 : f32
    %73 = vector.broadcast %cst_37 : f32 to vector<2x8x8xf32>
    %74 = arith.mulf %72, %73 : vector<2x8x8xf32>
    %cst_38 = arith.constant dense<0xFF800000> : vector<2x8xf32>
    %75 = vector.multi_reduction <maximumf>, %74, %cst_38 [2] : vector<2x8x8xf32> to vector<2x8xf32>
    %76 = vector.shape_cast %75 : vector<2x8xf32> to vector<2x8x1xf32>
    %77 = vector.broadcast %76 : vector<2x8x1xf32> to vector<2x8x8xf32>
    %78 = arith.subf %74, %77 : vector<2x8x8xf32>
    %79 = math.exp %78 : vector<2x8x8xf32>
    %cst_39 = arith.constant dense<0.000000e+00> : vector<2x8xf32>
    %80 = vector.multi_reduction <add>, %79, %cst_39 [2] : vector<2x8x8xf32> to vector<2x8xf32>
    %81 = vector.shape_cast %80 : vector<2x8xf32> to vector<2x8x1xf32>
    %82 = tpu.reciprocal %81 {approx = true} : vector<2x8x1xf32> -> vector<2x8x1xf32>
    %83 = vector.broadcast %82 : vector<2x8x1xf32> to vector<2x8x8xf32>
    %84 = arith.mulf %79, %83 : vector<2x8x8xf32>
    %c2 = arith.constant 2 : index
    %c0_40 = arith.constant 0 : index
    %c0_41 = arith.constant 0 : index
    %c0_42 = arith.constant 0 : index
    %85 = vector.load %arg12[%c2, %c0_40, %c0_41, %c0_42] : memref<4x2x8x8xf32, #tpu.memory_space<vmem>>, vector<1x2x8x8xf32>
    %86 = vector.shape_cast %85 : vector<1x2x8x8xf32> to vector<2x8x8xf32>
    %87 = vector.shape_cast %84 : vector<2x8x8xf32> to vector<1x2x8x8xf32>
    tpu.vector_store %arg12[%c2, %c0_40, %c0_41, %c0_42], %87 {strides = array<i32>} : memref<4x2x8x8xf32, #tpu.memory_space<vmem>>, vector<1x2x8x8xf32>,
    "tpu.trace_start"() <{level = 10 : i32, message = "bij,bjd->bid"}> : () -> ()
    %cst_43 = arith.constant dense<0.000000e+00> : vector<2x8x8xf32>
    %88 = tpu.matmul %84, %71, %cst_43 {dimension_numbers = #tpu.dot_dimension_numbers<[2], [1], [1], [2], [0, 0, 0, 1, 1, 2], [0], [0]>} : vector<2x8x8xf32>, vector<2x8x8xf32>, vector<2x8x8xf32> -> vector<2x8x8xf32>
    "tpu.trace_stop"() : () -> ()
    %89 = vector.shape_cast %88 : vector<2x8x8xf32> to vector<16x8xf32>
    %90 = vector.extract_strided_slice %5 {offsets = [0, 24], sizes = [16, 8], strides = [1, 1]} : vector<16x32xf32> to vector<16x8xf32>
    %91 = vector.shape_cast %90 : vector<16x8xf32> to vector<2x8x8xf32>
    %92 = vector.extract_strided_slice %11 {offsets = [0, 24], sizes = [16, 8], strides = [1, 1]} : vector<16x32xf32> to vector<16x8xf32>
    %93 = vector.shape_cast %92 : vector<16x8xf32> to vector<2x8x8xf32>
    %94 = vector.extract_strided_slice %17 {offsets = [0, 24], sizes = [16, 8], strides = [1, 1]} : vector<16x32xf32> to vector<16x8xf32>
    %95 = vector.shape_cast %94 : vector<16x8xf32> to vector<2x8x8xf32>
    "tpu.trace_start"() <{level = 10 : i32, message = "bid,bjd->bij"}> : () -> ()
    %cst_44 = arith.constant dense<0.000000e+00> : vector<2x8x8xf32>
    %96 = tpu.matmul %91, %93, %cst_44 {dimension_numbers = #tpu.dot_dimension_numbers<[2], [2], [1], [1], [0, 0, 0, 1, 1, 1], [0], [0]>} : vector<2x8x8xf32>, vector<2x8x8xf32>, vector<2x8x8xf32> -> vector<2x8x8xf32>
    "tpu.trace_stop"() : () -> ()
    %cst_45 = arith.constant 0.353553385 : f32
    %97 = vector.broadcast %cst_45 : f32 to vector<2x8x8xf32>
    %98 = arith.mulf %96, %97 : vector<2x8x8xf32>
    %cst_46 = arith.constant dense<0xFF800000> : vector<2x8xf32>
    %99 = vector.multi_reduction <maximumf>, %98, %cst_46 [2] : vector<2x8x8xf32> to vector<2x8xf32>
    %100 = vector.shape_cast %99 : vector<2x8xf32> to vector<2x8x1xf32>
    %101 = vector.broadcast %100 : vector<2x8x1xf32> to vector<2x8x8xf32>
    %102 = arith.subf %98, %101 : vector<2x8x8xf32>
    %103 = math.exp %102 : vector<2x8x8xf32>
    %cst_47 = arith.constant dense<0.000000e+00> : vector<2x8xf32>
    %104 = vector.multi_reduction <add>, %103, %cst_47 [2] : vector<2x8x8xf32> to vector<2x8xf32>
    %105 = vector.shape_cast %104 : vector<2x8xf32> to vector<2x8x1xf32>
    %106 = tpu.reciprocal %105 {approx = true} : vector<2x8x1xf32> -> vector<2x8x1xf32>
    %107 = vector.broadcast %106 : vector<2x8x1xf32> to vector<2x8x8xf32>
    %108 = arith.mulf %103, %107 : vector<2x8x8xf32>
    %c3 = arith.constant 3 : index
    %c0_48 = arith.constant 0 : index
    %c0_49 = arith.constant 0 : index
    %c0_50 = arith.constant 0 : index
    %109 = vector.load %arg12[%c3, %c0_48, %c0_49, %c0_50] : memref<4x2x8x8xf32, #tpu.memory_space<vmem>>, vector<1x2x8x8xf32>
    %110 = vector.shape_cast %109 : vector<1x2x8x8xf32> to vector<2x8x8xf32>
    %111 = vector.shape_cast %108 : vector<2x8x8xf32> to vector<1x2x8x8xf32>
    tpu.vector_store %arg12[%c3, %c0_48, %c0_49, %c0_50], %111 {strides = array<i32>} : memref<4x2x8x8xf32, #tpu.memory_space<vmem>>, vector<1x2x8x8xf32>,
    "tpu.trace_start"() <{level = 10 : i32, message = "bij,bjd->bid"}> : () -> ()
    %cst_51 = arith.constant dense<0.000000e+00> : vector<2x8x8xf32>
    %112 = tpu.matmul %108, %95, %cst_51 {dimension_numbers = #tpu.dot_dimension_numbers<[2], [1], [1], [2], [0, 0, 0, 1, 1, 2], [0], [0]>} : vector<2x8x8xf32>, vector<2x8x8xf32>, vector<2x8x8xf32> -> vector<2x8x8xf32>
    "tpu.trace_stop"() : () -> ()
    %113 = vector.shape_cast %112 : vector<2x8x8xf32> to vector<16x8xf32>
    %114 = tpu.concatenate %41, %65, %89, %113 in 1 : vector<16x8xf32>, vector<16x8xf32>, vector<16x8xf32>, vector<16x8xf32> -> vector<16x32xf32>
    %c0_52 = arith.constant 0 : index
    %c0_53 = arith.constant 0 : index
    %115 = vector.load %arg9[%c0_52, %c0_53] : memref<32x32xf32, #tpu.memory_space<vmem>>, vector<32x32xf32>
    %cst_54 = arith.constant dense<0.000000e+00> : vector<16x32xf32>
    %116 = tpu.matmul %114, %115, %cst_54 {dimension_numbers = #tpu.dot_dimension_numbers<[1], [0], [0], [1], [0, 0, 1, 1], [], []>} : vector<16x32xf32>, vector<32x32xf32>, vector<16x32xf32> -> vector<16x32xf32>
    %c0_55 = arith.constant 0 : index
    %c0_56 = arith.constant 0 : index
    %117 = vector.load %arg10[%c0_55, %c0_56] : memref<1x32xf32, #tpu.memory_space<vmem>>, vector<1x32xf32>
    %118 = vector.broadcast %117 : vector<1x32xf32> to vector<16x32xf32>
    %119 = arith.addf %116, %118 : vector<16x32xf32>
    %c0_57 = arith.constant 0 : index
    %c0_58 = arith.constant 0 : index
    %120 = vector.load %arg11[%c0_57, %c0_58] : memref<16x32xf32, #tpu.memory_space<vmem>>, vector<16x32xf32>
    tpu.vector_store %arg11[%c0_57, %c0_58], %119 {strides = array<i32>} : memref<16x32xf32, #tpu.memory_space<vmem>>, vector<16x32xf32>,
    return
  }
}

</mosaic_0001>

<llo_original>
// kernel: multihead_attention.1
$region0: #{multihead_attention.1}
  #allocation0 [shape = 'u32[]', space=smem, size = 0x4, offset = 0x4, fixed_abs, tag = 'smem constant byte address 0x4 - core index']
  #allocation1 [shape = 'u32[72,128]{1,0:T(1,128)}', space=vmem, size = 0x9000, scoped, tag = 'internal scratch']
  %s0 = inlined_call_operand.hbm [shape: f32[16,32], index: 0, kind: input, shape index: {}]
  %s1 = inlined_call_operand.hbm [shape: f32[16,32], index: 1, kind: input, shape index: {}]
  %s2 = inlined_call_operand.hbm [shape: f32[16,32], index: 2, kind: input, shape index: {}]
  %s3 = inlined_call_operand.hbm [shape: f32[32,32], index: 3, kind: input, shape index: {}]
  %s4 = inlined_call_operand.vmem [shape: f32[1,32], index: 4, kind: input, shape index: {}]
  %s5 = inlined_call_operand.hbm [shape: f32[32,32], index: 5, kind: input, shape index: {}]
  %s6 = inlined_call_operand.vmem [shape: f32[1,32], index: 6, kind: input, shape index: {}]
  %s7 = inlined_call_operand.hbm [shape: f32[32,32], index: 7, kind: input, shape index: {}]
  %s8 = inlined_call_operand.vmem [shape: f32[1,32], index: 8, kind: input, shape index: {}]
  %s9 = inlined_call_operand.hbm [shape: f32[32,32], index: 9, kind: input, shape index: {}]
  %s10 = inlined_call_operand.vmem [shape: f32[1,32], index: 10, kind: input, shape index: {}]
  %s11 = inlined_call_operand.hbm [shape: f32[16,32], index: 11, kind: output, shape index: {0}]
  %s12 = inlined_call_operand.vmem [shape: f32[4,2,8,8], index: 12, kind: output, shape index: {1}]
  %13 = xla_tuple %s11, %s12
  %s14 = sld [smem:[#allocation0]]
  $region90: #{multihead_attention.1} parent=0
    _
  %s16 = ssub.s32 1, %s14
  %s17 = scalar_select 0, %s16, %s14
  $region1: #{multihead_attention.1} parent=0
    #allocation2 [shape = 'u8[8192]{0}', space=vmem, size = 0x2000, scoped, tag = 'input window, operand 0, single buffered']
    #allocation3 [shape = 's32[1]{0}', space=sflag, size = 0x4, scoped, tag = 'scoped memory for multihead_attention.1']
    #allocation4 [shape = 's32[1]{0}', space=sflag, size = 0x4, scoped, tag = 'scoped memory for multihead_attention.1']
    #allocation5 [shape = 'u8[8192]{0}', space=vmem, size = 0x2000, scoped, tag = 'input window, operand 1, single buffered']
    #allocation6 [shape = 's32[1]{0}', space=sflag, size = 0x4, scoped, tag = 'scoped memory for multihead_attention.1']
    #allocation7 [shape = 'u8[8192]{0}', space=vmem, size = 0x2000, scoped, tag = 'input window, operand 2, single buffered']
    #allocation8 [shape = 'u8[16384]{0}', space=vmem, size = 0x4000, scoped, tag = 'input window, operand 3, single buffered']
    #allocation9 [shape = 's32[1]{0}', space=sflag, size = 0x4, scoped, tag = 'scoped memory for multihead_attention.1']
    #allocation10 [shape = 'u8[16384]{0}', space=vmem, size = 0x4000, scoped, tag = 'input window, operand 5, single buffered']
    #allocation11 [shape = 'u8[16384]{0}', space=vmem, size = 0x4000, scoped, tag = 'input window, operand 7, single buffered']
    #allocation12 [shape = 's32[1]{0}', space=sflag, size = 0x4, scoped, tag = 'scoped memory for multihead_attention.1']
    #allocation13 [shape = 'u8[16384]{0}', space=vmem, size = 0x4000, scoped, tag = 'input window, operand 9, single buffered']
    #allocation14 [shape = 'u8[8192]{0}', space=vmem, size = 0x2000, scoped, tag = 'output window, operand 0, single buffered']
    %18 = vsyncpa [#allocation3], 0
    %19 = vsyncpa [#allocation6], 0
    %20 = vsyncpa [#allocation9], 0
    %21 = vsyncpa [#allocation12], 0
    %22 = vsyncpa [#allocation4], 0
    // Predicated region
    $region2: #{multihead_attention.1} parent=1 // pred_check
      _
    $region3: #{multihead_attention.1} parent=1 // pred_check_branch
      %24 = sbr.rel (0) target = $region5
    $region4: #{multihead_attention.1} parent=1 // pred_region
      %26 = vsyncadd [#allocation3], 0
      %s27 = sshll.u32 %s0, 4
      %s28 = int_to_ptr.hbm [resolvable:$true] %s27
      %s29 = sshll.u32 [#allocation2], 4
      %s30 = int_to_ptr.vmem [resolvable:$true] %s29
      %35 = dma.hbm_to_vmem [thread:$0]  %s28, 256, %s30, [#allocation3], 128, 128, 8
    $region5: #{multihead_attention.1} parent=1 // pred_fallthru
      _
    // Predicated region
    $region6: #{multihead_attention.1} parent=1 // pred_check
      _
    $region7: #{multihead_attention.1} parent=1 // pred_check_branch
      %37 = sbr.rel (0) target = $region9
    $region8: #{multihead_attention.1} parent=1 // pred_region
      %39 = vsyncadd [#allocation6], 0
      %s40 = sshll.u32 %s1, 4
      %s41 = int_to_ptr.hbm [resolvable:$true] %s40
      %s42 = sshll.u32 [#allocation5], 4
      %s43 = int_to_ptr.vmem [resolvable:$true] %s42
      %48 = dma.hbm_to_vmem [thread:$0]  %s41, 256, %s43, [#allocation6], 128, 128, 8
    $region9: #{multihead_attention.1} parent=1 // pred_fallthru
      _
    // Predicated region
    $region10: #{multihead_attention.1} parent=1 // pred_check
      _
    $region11: #{multihead_attention.1} parent=1 // pred_check_branch
      %50 = sbr.rel (0) target = $region13
    $region12: #{multihead_attention.1} parent=1 // pred_region
      %52 = vsyncadd [#allocation6], 0
      %s53 = sshll.u32 %s2, 4
      %s54 = int_to_ptr.hbm [resolvable:$true] %s53
      %s55 = sshll.u32 [#allocation7], 4
      %s56 = int_to_ptr.vmem [resolvable:$true] %s55
      %61 = dma.hbm_to_vmem [thread:$0]  %s54, 256, %s56, [#allocation6], 128, 128, 8
    $region13: #{multihead_attention.1} parent=1 // pred_fallthru
      _
    // Predicated region
    $region14: #{multihead_attention.1} parent=1 // pred_check
      _
    $region15: #{multihead_attention.1} parent=1 // pred_check_branch
      %63 = sbr.rel (0) target = $region17
    $region16: #{multihead_attention.1} parent=1 // pred_region
      %65 = vsyncadd [#allocation9], 0
      %s66 = sshll.u32 %s3, 4
      %s67 = int_to_ptr.hbm [resolvable:$true] %s66
      %s68 = sshll.u32 [#allocation8], 4
      %s69 = int_to_ptr.vmem [resolvable:$true] %s68
      %74 = dma.hbm_to_vmem [thread:$0]  %s67, 512, %s69, [#allocation9], 128, 128, 8
    $region17: #{multihead_attention.1} parent=1 // pred_fallthru
      _
    // Predicated region
    $region18: #{multihead_attention.1} parent=1 // pred_check
      _
    $region19: #{multihead_attention.1} parent=1 // pred_check_branch
      %76 = sbr.rel (0) target = $region21
    $region20: #{multihead_attention.1} parent=1 // pred_region
      _
    $region21: #{multihead_attention.1} parent=1 // pred_fallthru
      _
    // Predicated region
    $region22: #{multihead_attention.1} parent=1 // pred_check
      _
    $region23: #{multihead_attention.1} parent=1 // pred_check_branch
      %78 = sbr.rel (0) target = $region25
    $region24: #{multihead_attention.1} parent=1 // pred_region
      %80 = vsyncadd [#allocation9], 0
      %s81 = sshll.u32 %s5, 4
      %s82 = int_to_ptr.hbm [resolvable:$true] %s81
      %s83 = sshll.u32 [#allocation10], 4
      %s84 = int_to_ptr.vmem [resolvable:$true] %s83
      %89 = dma.hbm_to_vmem [thread:$0]  %s82, 512, %s84, [#allocation9], 128, 128, 8
    $region25: #{multihead_attention.1} parent=1 // pred_fallthru
      _
    // Predicated region
    $region26: #{multihead_attention.1} parent=1 // pred_check
      _
    $region27: #{multihead_attention.1} parent=1 // pred_check_branch
      %91 = sbr.rel (0) target = $region29
    $region28: #{multihead_attention.1} parent=1 // pred_region
      _
    $region29: #{multihead_attention.1} parent=1 // pred_fallthru
      _
    // Predicated region
    $region30: #{multihead_attention.1} parent=1 // pred_check
      _
    $region31: #{multihead_attention.1} parent=1 // pred_check_branch
      %93 = sbr.rel (0) target = $region33
    $region32: #{multihead_attention.1} parent=1 // pred_region
      %95 = vsyncadd [#allocation12], 0
      %s96 = sshll.u32 %s7, 4
      %s97 = int_to_ptr.hbm [resolvable:$true] %s96
      %s98 = sshll.u32 [#allocation11], 4
      %s99 = int_to_ptr.vmem [resolvable:$true] %s98
      %104 = dma.hbm_to_vmem [thread:$0]  %s97, 512, %s99, [#allocation12], 128, 128, 8
    $region33: #{multihead_attention.1} parent=1 // pred_fallthru
      _
    // Predicated region
    $region34: #{multihead_attention.1} parent=1 // pred_check
      _
    $region35: #{multihead_attention.1} parent=1 // pred_check_branch
      %106 = sbr.rel (0) target = $region37
    $region36: #{multihead_attention.1} parent=1 // pred_region
      _
    $region37: #{multihead_attention.1} parent=1 // pred_fallthru
      _
    // Predicated region
    $region38: #{multihead_attention.1} parent=1 // pred_check
      _
    $region39: #{multihead_attention.1} parent=1 // pred_check_branch
      %108 = sbr.rel (0) target = $region41
    $region40: #{multihead_attention.1} parent=1 // pred_region
      %110 = vsyncadd [#allocation12], 0
      %s111 = sshll.u32 %s9, 4
      %s112 = int_to_ptr.hbm [resolvable:$true] %s111
      %s113 = sshll.u32 [#allocation13], 4
      %s114 = int_to_ptr.vmem [resolvable:$true] %s113
      %119 = dma.hbm_to_vmem [thread:$0]  %s112, 512, %s114, [#allocation12], 128, 128, 8
    $region41: #{multihead_attention.1} parent=1 // pred_fallthru
      _
    // Predicated region
    $region42: #{multihead_attention.1} parent=1 // pred_check
      _
    $region43: #{multihead_attention.1} parent=1 // pred_check_branch
      %121 = sbr.rel (0) target = $region45
    $region44: #{multihead_attention.1} parent=1 // pred_region
      _
    $region45: #{multihead_attention.1} parent=1 // pred_fallthru
      _
    // Predicated region
    $region46: #{multihead_attention.1} parent=1 // pred_check
      _
    $region47: #{multihead_attention.1} parent=1 // pred_check_branch
      %123 = sbr.rel (0) target = $region49
    $region48: #{multihead_attention.1} parent=1 // pred_region
      %125 = dma.done [#allocation3], 256
    $region49: #{multihead_attention.1} parent=1 // pred_fallthru
      _
    // Predicated region
    $region50: #{multihead_attention.1} parent=1 // pred_check
      _
    $region51: #{multihead_attention.1} parent=1 // pred_check_branch
      %127 = sbr.rel (0) target = $region53
    $region52: #{multihead_attention.1} parent=1 // pred_region
      %129 = dma.done [#allocation6], 256
    $region53: #{multihead_attention.1} parent=1 // pred_fallthru
      _
    // Predicated region
    $region54: #{multihead_attention.1} parent=1 // pred_check
      _
    $region55: #{multihead_attention.1} parent=1 // pred_check_branch
      %131 = sbr.rel (0) target = $region57
    $region56: #{multihead_attention.1} parent=1 // pred_region
      %133 = dma.done [#allocation6], 256
    $region57: #{multihead_attention.1} parent=1 // pred_fallthru
      _
    // Predicated region
    $region58: #{multihead_attention.1} parent=1 // pred_check
      _
    $region59: #{multihead_attention.1} parent=1 // pred_check_branch
      %135 = sbr.rel (0) target = $region61
    $region60: #{multihead_attention.1} parent=1 // pred_region
      %137 = dma.done [#allocation9], 512
    $region61: #{multihead_attention.1} parent=1 // pred_fallthru
      _
    // Predicated region
    $region62: #{multihead_attention.1} parent=1 // pred_check
      _
    $region63: #{multihead_attention.1} parent=1 // pred_check_branch
      %139 = sbr.rel (0) target = $region65
    $region64: #{multihead_attention.1} parent=1 // pred_region
      %141 = dma.done [#allocation9], 512
    $region65: #{multihead_attention.1} parent=1 // pred_fallthru
      _
    // Predicated region
    $region66: #{multihead_attention.1} parent=1 // pred_check
      _
    $region67: #{multihead_attention.1} parent=1 // pred_check_branch
      %143 = sbr.rel (0) target = $region69
    $region68: #{multihead_attention.1} parent=1 // pred_region
      %145 = dma.done [#allocation12], 512
    $region69: #{multihead_attention.1} parent=1 // pred_fallthru
      _
    // Predicated region
    $region70: #{multihead_attention.1} parent=1 // pred_check
      _
    $region71: #{multihead_attention.1} parent=1 // pred_check_branch
      %147 = sbr.rel (0) target = $region73
    $region72: #{multihead_attention.1} parent=1 // pred_region
      %149 = dma.done [#allocation12], 512
    $region73: #{multihead_attention.1} parent=1 // pred_fallthru
      _
    %v150 = vld [vmem:[#allocation2] sm:$0xff]
    %v151 = vld [vmem:[#allocation2 + $0x8] sm:$0xff]
    %v152 = vld [vmem:[#allocation8] sm:$0xff]
    %v153 = vld [vmem:[#allocation8 + $0x8] sm:$0xff]
    %v154 = vld [vmem:[#allocation8 + $0x10] sm:$0xff]
    %v155 = vld [vmem:[#allocation8 + $0x18] sm:$0xff]
    %v156 = vld [vmem:[%s4] sm:$0x1]
    %v158 = vperm.slane %v156, 0
    %vm160 = vcmask 261120
    %v162 = vsel %vm160, %v150, 0
    %v165 = vsel %vm160, %v151, 0
    %167 = vmatpush.msra.mxu0 0.0
    %168 = vmatpush.msra.mxu0 0.0
    %169 = vmatpush.msra.mxu0 0.0
    %170 = vmatpush.msra.mxu0 0.0
    %171 = vmatpush.msra.mxu0 0.0
    %172 = vmatpush.msra.mxu0 0.0
    %173 = vmatpush.msra.mxu0 0.0
    %174 = vmatpush.msra.mxu0 0.0
    %175 = vmatpush.msra.mxu0 0.0
    %176 = vmatpush.msra.mxu0 0.0
    %177 = vmatpush.msra.mxu0 0.0
    %178 = vmatpush.msra.mxu0 0.0
    %179 = vmatpush.msra.mxu0 %v155
    %180 = vmatpush.msra.mxu0 %v154
    %181 = vmatpush.msra.mxu0 %v153
    %182 = vmatpush.msra.mxu0 %v152
    %183 = vmatmul.f32.gmra.mxu0 %v162
    %v184 = vpop.f32.mrf.mxu0
    %v185 = vadd.f32 %v158, %v184
    %186 = vmatmul.f32.gmra.mxu0 %v165
    %v187 = vpop.f32.mrf.mxu0
    %v188 = vadd.f32 %v158, %v187
    %189 = vdwg.mxu0
    %v190 = vld [vmem:[#allocation5] sm:$0xff]
    %v191 = vld [vmem:[#allocation5 + $0x8] sm:$0xff]
    %v192 = vld [vmem:[#allocation10] sm:$0xff]
    %v193 = vld [vmem:[#allocation10 + $0x8] sm:$0xff]
    %v194 = vld [vmem:[#allocation10 + $0x10] sm:$0xff]
    %v195 = vld [vmem:[#allocation10 + $0x18] sm:$0xff]
    %v196 = vld [vmem:[%s6] sm:$0x1]
    %v198 = vperm.slane %v196, 0
    %v201 = vsel %vm160, %v190, 0
    %v204 = vsel %vm160, %v191, 0
    %206 = vmatpush.msra.mxu0 0.0
    %207 = vmatpush.msra.mxu0 0.0
    %208 = vmatpush.msra.mxu0 0.0
    %209 = vmatpush.msra.mxu0 0.0
    %210 = vmatpush.msra.mxu0 0.0
    %211 = vmatpush.msra.mxu0 0.0
    %212 = vmatpush.msra.mxu0 0.0
    %213 = vmatpush.msra.mxu0 0.0
    %214 = vmatpush.msra.mxu0 0.0
    %215 = vmatpush.msra.mxu0 0.0
    %216 = vmatpush.msra.mxu0 0.0
    %217 = vmatpush.msra.mxu0 0.0
    %218 = vmatpush.msra.mxu0 %v195
    %219 = vmatpush.msra.mxu0 %v194
    %220 = vmatpush.msra.mxu0 %v193
    %221 = vmatpush.msra.mxu0 %v192
    %222 = vmatmul.f32.gmra.mxu0 %v201
    %v223 = vpop.f32.mrf.mxu0
    %v224 = vadd.f32 %v198, %v223
    %225 = vmatmul.f32.gmra.mxu0 %v204
    %v226 = vpop.f32.mrf.mxu0
    %v227 = vadd.f32 %v198, %v226
    %228 = vdwg.mxu0
    %v229 = vld [vmem:[#allocation7] sm:$0xff]
    %v230 = vld [vmem:[#allocation7 + $0x8] sm:$0xff]
    %v231 = vld [vmem:[#allocation11] sm:$0xff]
    %v232 = vld [vmem:[#allocation11 + $0x8] sm:$0xff]
    %v233 = vld [vmem:[#allocation11 + $0x10] sm:$0xff]
    %v234 = vld [vmem:[#allocation11 + $0x18] sm:$0xff]
    %v235 = vld [vmem:[%s8] sm:$0x1]
    %v237 = vperm.slane %v235, 0
    %v240 = vsel %vm160, %v229, 0
    %v243 = vsel %vm160, %v230, 0
    %245 = vmatpush.msra.mxu0 0.0
    %246 = vmatpush.msra.mxu0 0.0
    %247 = vmatpush.msra.mxu0 0.0
    %248 = vmatpush.msra.mxu0 0.0
    %249 = vmatpush.msra.mxu0 0.0
    %250 = vmatpush.msra.mxu0 0.0
    %251 = vmatpush.msra.mxu0 0.0
    %252 = vmatpush.msra.mxu0 0.0
    %253 = vmatpush.msra.mxu0 0.0
    %254 = vmatpush.msra.mxu0 0.0
    %255 = vmatpush.msra.mxu0 0.0
    %256 = vmatpush.msra.mxu0 0.0
    %257 = vmatpush.msra.mxu0 %v234
    %258 = vmatpush.msra.mxu0 %v233
    %259 = vmatpush.msra.mxu0 %v232
    %260 = vmatpush.msra.mxu0 %v231
    %261 = vmatmul.f32.gmra.mxu0 %v240
    %v262 = vpop.f32.mrf.mxu0
    %v263 = vadd.f32 %v237, %v262
    %264 = vmatmul.f32.gmra.mxu0 %v243
    %v265 = vpop.f32.mrf.mxu0
    %v266 = vadd.f32 %v237, %v265
    %267 = vdwg.mxu0
    %vm268 = vcmask 64512
    %v270 = vsel %vm268, %v185, 0
    %v273 = vsel %vm268, %v224, 0
    %275 = vmatpush.xpose.msra.mxu0 0.0
    %276 = vmatpush.xpose.msra.mxu0 0.0
    %277 = vmatpush.xpose.msra.mxu0 0.0
    %278 = vmatpush.xpose.msra.mxu0 0.0
    %279 = vmatpush.xpose.msra.mxu0 0.0
    %280 = vmatpush.xpose.msra.mxu0 0.0
    %281 = vmatpush.xpose.msra.mxu0 0.0
    %282 = vmatpush.xpose.msra.mxu0 0.0
    %283 = vmatpush.xpose.msra.mxu0 0.0
    %284 = vmatpush.xpose.msra.mxu0 0.0
    %285 = vmatpush.xpose.msra.mxu0 0.0
    %286 = vmatpush.xpose.msra.mxu0 0.0
    %287 = vmatpush.xpose.msra.mxu0 0.0
    %288 = vmatpush.xpose.msra.mxu0 0.0
    %289 = vmatpush.xpose.msra.mxu0 0.0
    %290 = vmatpush.xpose.msra.mxu0 %v273
    %291 = vmatmul.f32.gmra.mxu0 %v270
    %v292 = vpop.f32.mrf.mxu0
    %v293 = vadd.f32 0.0, %v292
    %294 = vdwg.mxu0
    %v296 = vsel %vm268, %v188, 0
    %v299 = vsel %vm268, %v227, 0
    %301 = vmatpush.xpose.msra.mxu0 0.0
    %302 = vmatpush.xpose.msra.mxu0 0.0
    %303 = vmatpush.xpose.msra.mxu0 0.0
    %304 = vmatpush.xpose.msra.mxu0 0.0
    %305 = vmatpush.xpose.msra.mxu0 0.0
    %306 = vmatpush.xpose.msra.mxu0 0.0
    %307 = vmatpush.xpose.msra.mxu0 0.0
    %308 = vmatpush.xpose.msra.mxu0 0.0
    %309 = vmatpush.xpose.msra.mxu0 0.0
    %310 = vmatpush.xpose.msra.mxu0 0.0
    %311 = vmatpush.xpose.msra.mxu0 0.0
    %312 = vmatpush.xpose.msra.mxu0 0.0
    %313 = vmatpush.xpose.msra.mxu0 0.0
    %314 = vmatpush.xpose.msra.mxu0 0.0
    %315 = vmatpush.xpose.msra.mxu0 0.0
    %316 = vmatpush.xpose.msra.mxu0 %v299
    %317 = vmatmul.f32.gmra.mxu0 %v296
    %v318 = vpop.f32.mrf.mxu0
    %v319 = vadd.f32 0.0, %v318
    %320 = vdwg.mxu0
    %v321 = vmul.f32 %v293, 0.35355338
    %v322 = vmul.f32 %v319, 0.35355338
    %v323 = vsel %vm268, %v321, -inf
    %324 = vmax.xlane.f32.xlu0 %v323
    %v325 = vpop.xlane.xlu0 %324
    %v326 = vsel %vm268, %v322, -inf
    %327 = vmax.xlane.f32.xlu0 %v326
    %v328 = vpop.xlane.xlu0 %327
    %v329 = vsub.f32 %v321, %v325
    %v330 = vsub.f32 %v322, %v328
    %v331 = vmul.f32 %v329, 1.442695
    %v332 = vpow.pop %v331
    %v333 = vmul.f32 %v330, 1.442695
    %v334 = vpow.pop %v333
    %v335 = vsel %vm268, %v332, 0.0
    %336 = vadd.xlane.f32.xlu0 %v335
    %v337 = vpop.xlane.xlu0 %336
    %v338 = vsel %vm268, %v334, 0.0
    %339 = vadd.xlane.f32.xlu0 %v338
    %v340 = vpop.xlane.xlu0 %339
    %v341 = vrcp.pop %v337
    %v342 = vrcp.pop %v340
    %v343 = vmul.f32 %v332, %v341
    %v344 = vmul.f32 %v334, %v342
    %345 = vst.msk [vmem:[%s12] sm:$0xff] %vm268, %v343
    %346 = vst.msk [vmem:[%s12 + $0x8] sm:$0xff] %vm268, %v344
    %v348 = vsel %vm268, %v343, 0
    %350 = vmatpush.msra.mxu0 0.0
    %351 = vmatpush.msra.mxu0 0.0
    %352 = vmatpush.msra.mxu0 0.0
    %353 = vmatpush.msra.mxu0 0.0
    %354 = vmatpush.msra.mxu0 0.0
    %355 = vmatpush.msra.mxu0 0.0
    %356 = vmatpush.msra.mxu0 0.0
    %357 = vmatpush.msra.mxu0 0.0
    %358 = vmatpush.msra.mxu0 0.0
    %359 = vmatpush.msra.mxu0 0.0
    %360 = vmatpush.msra.mxu0 0.0
    %361 = vmatpush.msra.mxu0 0.0
    %362 = vmatpush.msra.mxu0 0.0
    %363 = vmatpush.msra.mxu0 0.0
    %364 = vmatpush.msra.mxu0 0.0
    %365 = vmatpush.msra.mxu0 %v263
    %366 = vmatmul.f32.gmra.mxu0 %v348
    %v367 = vpop.f32.mrf.mxu0
    %v368 = vadd.f32 0.0, %v367
    %369 = vdwg.mxu0
    %v371 = vsel %vm268, %v344, 0
    %373 = vmatpush.msra.mxu0 0.0
    %374 = vmatpush.msra.mxu0 0.0
    %375 = vmatpush.msra.mxu0 0.0
    %376 = vmatpush.msra.mxu0 0.0
    %377 = vmatpush.msra.mxu0 0.0
    %378 = vmatpush.msra.mxu0 0.0
    %379 = vmatpush.msra.mxu0 0.0
    %380 = vmatpush.msra.mxu0 0.0
    %381 = vmatpush.msra.mxu0 0.0
    %382 = vmatpush.msra.mxu0 0.0
    %383 = vmatpush.msra.mxu0 0.0
    %384 = vmatpush.msra.mxu0 0.0
    %385 = vmatpush.msra.mxu0 0.0
    %386 = vmatpush.msra.mxu0 0.0
    %387 = vmatpush.msra.mxu0 0.0
    %388 = vmatpush.msra.mxu0 %v266
    %389 = vmatmul.f32.gmra.mxu0 %v371
    %v390 = vpop.f32.mrf.mxu0
    %v391 = vadd.f32 0.0, %v390
    %392 = vdwg.mxu0
    %393 = vrot.lane.b32.xlu0 %v185, 120
    %v394 = vpop.permute.xlu0 %393
    %395 = vrot.lane.b32.xlu0 %v224, 120
    %v396 = vpop.permute.xlu0 %395
    %v397 = vsel %vm268, %v394, 0
    %v399 = vsel %vm268, %v396, 0
    %401 = vmatpush.xpose.msra.mxu0 0.0
    %402 = vmatpush.xpose.msra.mxu0 0.0
    %403 = vmatpush.xpose.msra.mxu0 0.0
    %404 = vmatpush.xpose.msra.mxu0 0.0
    %405 = vmatpush.xpose.msra.mxu0 0.0
    %406 = vmatpush.xpose.msra.mxu0 0.0
    %407 = vmatpush.xpose.msra.mxu0 0.0
    %408 = vmatpush.xpose.msra.mxu0 0.0
    %409 = vmatpush.xpose.msra.mxu0 0.0
    %410 = vmatpush.xpose.msra.mxu0 0.0
    %411 = vmatpush.xpose.msra.mxu0 0.0
    %412 = vmatpush.xpose.msra.mxu0 0.0
    %413 = vmatpush.xpose.msra.mxu0 0.0
    %414 = vmatpush.xpose.msra.mxu0 0.0
    %415 = vmatpush.xpose.msra.mxu0 0.0
    %416 = vmatpush.xpose.msra.mxu0 %v399
    %417 = vmatmul.f32.gmra.mxu0 %v397
    %v418 = vpop.f32.mrf.mxu0
    %v419 = vadd.f32 0.0, %v418
    %420 = vdwg.mxu0
    %421 = vrot.lane.b32.xlu0 %v188, 120
    %v422 = vpop.permute.xlu0 %421
    %423 = vrot.lane.b32.xlu0 %v227, 120
    %v424 = vpop.permute.xlu0 %423
    %v425 = vsel %vm268, %v422, 0
    %v427 = vsel %vm268, %v424, 0
    %429 = vmatpush.xpose.msra.mxu0 0.0
    %430 = vmatpush.xpose.msra.mxu0 0.0
    %431 = vmatpush.xpose.msra.mxu0 0.0
    %432 = vmatpush.xpose.msra.mxu0 0.0
    %433 = vmatpush.xpose.msra.mxu0 0.0
    %434 = vmatpush.xpose.msra.mxu0 0.0
    %435 = vmatpush.xpose.msra.mxu0 0.0
    %436 = vmatpush.xpose.msra.mxu0 0.0
    %437 = vmatpush.xpose.msra.mxu0 0.0
    %438 = vmatpush.xpose.msra.mxu0 0.0
    %439 = vmatpush.xpose.msra.mxu0 0.0
    %440 = vmatpush.xpose.msra.mxu0 0.0
    %441 = vmatpush.xpose.msra.mxu0 0.0
    %442 = vmatpush.xpose.msra.mxu0 0.0
    %443 = vmatpush.xpose.msra.mxu0 0.0
    %444 = vmatpush.xpose.msra.mxu0 %v427
    %445 = vmatmul.f32.gmra.mxu0 %v425
    %v446 = vpop.f32.mrf.mxu0
    %v447 = vadd.f32 0.0, %v446
    %448 = vdwg.mxu0
    %v449 = vmul.f32 %v419, 0.35355338
    %v450 = vmul.f32 %v447, 0.35355338
    %v451 = vsel %vm268, %v449, -inf
    %452 = vmax.xlane.f32.xlu0 %v451
    %v453 = vpop.xlane.xlu0 %452
    %v454 = vsel %vm268, %v450, -inf
    %455 = vmax.xlane.f32.xlu0 %v454
    %v456 = vpop.xlane.xlu0 %455
    %v457 = vsub.f32 %v449, %v453
    %v458 = vsub.f32 %v450, %v456
    %v459 = vmul.f32 %v457, 1.442695
    %v460 = vpow.pop %v459
    %v461 = vmul.f32 %v458, 1.442695
    %v462 = vpow.pop %v461
    %v463 = vsel %vm268, %v460, 0.0
    %464 = vadd.xlane.f32.xlu0 %v463
    %v465 = vpop.xlane.xlu0 %464
    %v466 = vsel %vm268, %v462, 0.0
    %467 = vadd.xlane.f32.xlu0 %v466
    %v468 = vpop.xlane.xlu0 %467
    %v469 = vrcp.pop %v465
    %v470 = vrcp.pop %v468
    %v471 = vmul.f32 %v460, %v469
    %v472 = vmul.f32 %v462, %v470
    %s473 = scalar_lea.vmem %s12, 16
    %474 = vst.msk [vmem:[%s473] sm:$0xff] %vm268, %v471
    %475 = vst.msk [vmem:[%s473 + $0x8] sm:$0xff] %vm268, %v472
    %477 = vrot.lane.b32.xlu0 %v263, 120
    %v478 = vpop.permute.xlu0 %477
    %v481 = vsel %vm268, %v471, 0
    %483 = vmatpush.msra.mxu0 0.0
    %484 = vmatpush.msra.mxu0 0.0
    %485 = vmatpush.msra.mxu0 0.0
    %486 = vmatpush.msra.mxu0 0.0
    %487 = vmatpush.msra.mxu0 0.0
    %488 = vmatpush.msra.mxu0 0.0
    %489 = vmatpush.msra.mxu0 0.0
    %490 = vmatpush.msra.mxu0 0.0
    %491 = vmatpush.msra.mxu0 0.0
    %492 = vmatpush.msra.mxu0 0.0
    %493 = vmatpush.msra.mxu0 0.0
    %494 = vmatpush.msra.mxu0 0.0
    %495 = vmatpush.msra.mxu0 0.0
    %496 = vmatpush.msra.mxu0 0.0
    %497 = vmatpush.msra.mxu0 0.0
    %498 = vmatpush.msra.mxu0 %v478
    %499 = vmatmul.f32.gmra.mxu0 %v481
    %v500 = vpop.f32.mrf.mxu0
    %v501 = vadd.f32 0.0, %v500
    %502 = vdwg.mxu0
    %504 = vrot.lane.b32.xlu0 %v266, 120
    %v505 = vpop.permute.xlu0 %504
    %v508 = vsel %vm268, %v472, 0
    %510 = vmatpush.msra.mxu0 0.0
    %511 = vmatpush.msra.mxu0 0.0
    %512 = vmatpush.msra.mxu0 0.0
    %513 = vmatpush.msra.mxu0 0.0
    %514 = vmatpush.msra.mxu0 0.0
    %515 = vmatpush.msra.mxu0 0.0
    %516 = vmatpush.msra.mxu0 0.0
    %517 = vmatpush.msra.mxu0 0.0
    %518 = vmatpush.msra.mxu0 0.0
    %519 = vmatpush.msra.mxu0 0.0
    %520 = vmatpush.msra.mxu0 0.0
    %521 = vmatpush.msra.mxu0 0.0
    %522 = vmatpush.msra.mxu0 0.0
    %523 = vmatpush.msra.mxu0 0.0
    %524 = vmatpush.msra.mxu0 0.0
    %525 = vmatpush.msra.mxu0 %v505
    %526 = vmatmul.f32.gmra.mxu0 %v508
    %v527 = vpop.f32.mrf.mxu0
    %v528 = vadd.f32 0.0, %v527
    %529 = vdwg.mxu0
    %530 = vrot.lane.b32.xlu0 %v185, 112
    %v531 = vpop.permute.xlu0 %530
    %532 = vrot.lane.b32.xlu0 %v224, 112
    %v533 = vpop.permute.xlu0 %532
    %v534 = vsel %vm268, %v531, 0
    %v536 = vsel %vm268, %v533, 0
    %538 = vmatpush.xpose.msra.mxu0 0.0
    %539 = vmatpush.xpose.msra.mxu0 0.0
    %540 = vmatpush.xpose.msra.mxu0 0.0
    %541 = vmatpush.xpose.msra.mxu0 0.0
    %542 = vmatpush.xpose.msra.mxu0 0.0
    %543 = vmatpush.xpose.msra.mxu0 0.0
    %544 = vmatpush.xpose.msra.mxu0 0.0
    %545 = vmatpush.xpose.msra.mxu0 0.0
    %546 = vmatpush.xpose.msra.mxu0 0.0
    %547 = vmatpush.xpose.msra.mxu0 0.0
    %548 = vmatpush.xpose.msra.mxu0 0.0
    %549 = vmatpush.xpose.msra.mxu0 0.0
    %550 = vmatpush.xpose.msra.mxu0 0.0
    %551 = vmatpush.xpose.msra.mxu0 0.0
    %552 = vmatpush.xpose.msra.mxu0 0.0
    %553 = vmatpush.xpose.msra.mxu0 %v536
    %554 = vmatmul.f32.gmra.mxu0 %v534
    %v555 = vpop.f32.mrf.mxu0
    %v556 = vadd.f32 0.0, %v555
    %557 = vdwg.mxu0
    %558 = vrot.lane.b32.xlu0 %v188, 112
    %v559 = vpop.permute.xlu0 %558
    %560 = vrot.lane.b32.xlu0 %v227, 112
    %v561 = vpop.permute.xlu0 %560
    %v562 = vsel %vm268, %v559, 0
    %v564 = vsel %vm268, %v561, 0
    %566 = vmatpush.xpose.msra.mxu0 0.0
    %567 = vmatpush.xpose.msra.mxu0 0.0
    %568 = vmatpush.xpose.msra.mxu0 0.0
    %569 = vmatpush.xpose.msra.mxu0 0.0
    %570 = vmatpush.xpose.msra.mxu0 0.0
    %571 = vmatpush.xpose.msra.mxu0 0.0
    %572 = vmatpush.xpose.msra.mxu0 0.0
    %573 = vmatpush.xpose.msra.mxu0 0.0
    %574 = vmatpush.xpose.msra.mxu0 0.0
    %575 = vmatpush.xpose.msra.mxu0 0.0
    %576 = vmatpush.xpose.msra.mxu0 0.0
    %577 = vmatpush.xpose.msra.mxu0 0.0
    %578 = vmatpush.xpose.msra.mxu0 0.0
    %579 = vmatpush.xpose.msra.mxu0 0.0
    %580 = vmatpush.xpose.msra.mxu0 0.0
    %581 = vmatpush.xpose.msra.mxu0 %v564
    %582 = vmatmul.f32.gmra.mxu0 %v562
    %v583 = vpop.f32.mrf.mxu0
    %v584 = vadd.f32 0.0, %v583
    %585 = vdwg.mxu0
    %v586 = vmul.f32 %v556, 0.35355338
    %v587 = vmul.f32 %v584, 0.35355338
    %v588 = vsel %vm268, %v586, -inf
    %589 = vmax.xlane.f32.xlu0 %v588
    %v590 = vpop.xlane.xlu0 %589
    %v591 = vsel %vm268, %v587, -inf
    %592 = vmax.xlane.f32.xlu0 %v591
    %v593 = vpop.xlane.xlu0 %592
    %v594 = vsub.f32 %v586, %v590
    %v595 = vsub.f32 %v587, %v593
    %v596 = vmul.f32 %v594, 1.442695
    %v597 = vpow.pop %v596
    %v598 = vmul.f32 %v595, 1.442695
    %v599 = vpow.pop %v598
    %v600 = vsel %vm268, %v597, 0.0
    %601 = vadd.xlane.f32.xlu0 %v600
    %v602 = vpop.xlane.xlu0 %601
    %v603 = vsel %vm268, %v599, 0.0
    %604 = vadd.xlane.f32.xlu0 %v603
    %v605 = vpop.xlane.xlu0 %604
    %v606 = vrcp.pop %v602
    %v607 = vrcp.pop %v605
    %v608 = vmul.f32 %v597, %v606
    %v609 = vmul.f32 %v599, %v607
    %s610 = scalar_lea.vmem %s12, 32
    %611 = vst.msk [vmem:[%s610] sm:$0xff] %vm268, %v608
    %612 = vst.msk [vmem:[%s610 + $0x8] sm:$0xff] %vm268, %v609
    %613 = vrot.lane.b32.xlu0 %v263, 112
    %v614 = vpop.permute.xlu0 %613
    %v617 = vsel %vm268, %v608, 0
    %619 = vmatpush.msra.mxu0 0.0
    %620 = vmatpush.msra.mxu0 0.0
    %621 = vmatpush.msra.mxu0 0.0
    %622 = vmatpush.msra.mxu0 0.0
    %623 = vmatpush.msra.mxu0 0.0
    %624 = vmatpush.msra.mxu0 0.0
    %625 = vmatpush.msra.mxu0 0.0
    %626 = vmatpush.msra.mxu0 0.0
    %627 = vmatpush.msra.mxu0 0.0
    %628 = vmatpush.msra.mxu0 0.0
    %629 = vmatpush.msra.mxu0 0.0
    %630 = vmatpush.msra.mxu0 0.0
    %631 = vmatpush.msra.mxu0 0.0
    %632 = vmatpush.msra.mxu0 0.0
    %633 = vmatpush.msra.mxu0 0.0
    %634 = vmatpush.msra.mxu0 %v614
    %635 = vmatmul.f32.gmra.mxu0 %v617
    %v636 = vpop.f32.mrf.mxu0
    %v637 = vadd.f32 0.0, %v636
    %638 = vdwg.mxu0
    %639 = vrot.lane.b32.xlu0 %v266, 112
    %v640 = vpop.permute.xlu0 %639
    %v643 = vsel %vm268, %v609, 0
    %645 = vmatpush.msra.mxu0 0.0
    %646 = vmatpush.msra.mxu0 0.0
    %647 = vmatpush.msra.mxu0 0.0
    %648 = vmatpush.msra.mxu0 0.0
    %649 = vmatpush.msra.mxu0 0.0
    %650 = vmatpush.msra.mxu0 0.0
    %651 = vmatpush.msra.mxu0 0.0
    %652 = vmatpush.msra.mxu0 0.0
    %653 = vmatpush.msra.mxu0 0.0
    %654 = vmatpush.msra.mxu0 0.0
    %655 = vmatpush.msra.mxu0 0.0
    %656 = vmatpush.msra.mxu0 0.0
    %657 = vmatpush.msra.mxu0 0.0
    %658 = vmatpush.msra.mxu0 0.0
    %659 = vmatpush.msra.mxu0 0.0
    %660 = vmatpush.msra.mxu0 %v640
    %661 = vmatmul.f32.gmra.mxu0 %v643
    %v662 = vpop.f32.mrf.mxu0
    %v663 = vadd.f32 0.0, %v662
    %664 = vdwg.mxu0
    %665 = vrot.lane.b32.xlu0 %v185, 104
    %v666 = vpop.permute.xlu0 %665
    %667 = vrot.lane.b32.xlu0 %v224, 104
    %v668 = vpop.permute.xlu0 %667
    %v669 = vsel %vm268, %v666, 0
    %v671 = vsel %vm268, %v668, 0
    %673 = vmatpush.xpose.msra.mxu0 0.0
    %674 = vmatpush.xpose.msra.mxu0 0.0
    %675 = vmatpush.xpose.msra.mxu0 0.0
    %676 = vmatpush.xpose.msra.mxu0 0.0
    %677 = vmatpush.xpose.msra.mxu0 0.0
    %678 = vmatpush.xpose.msra.mxu0 0.0
    %679 = vmatpush.xpose.msra.mxu0 0.0
    %680 = vmatpush.xpose.msra.mxu0 0.0
    %681 = vmatpush.xpose.msra.mxu0 0.0
    %682 = vmatpush.xpose.msra.mxu0 0.0
    %683 = vmatpush.xpose.msra.mxu0 0.0
    %684 = vmatpush.xpose.msra.mxu0 0.0
    %685 = vmatpush.xpose.msra.mxu0 0.0
    %686 = vmatpush.xpose.msra.mxu0 0.0
    %687 = vmatpush.xpose.msra.mxu0 0.0
    %688 = vmatpush.xpose.msra.mxu0 %v671
    %689 = vmatmul.f32.gmra.mxu0 %v669
    %v690 = vpop.f32.mrf.mxu0
    %v691 = vadd.f32 0.0, %v690
    %692 = vdwg.mxu0
    %693 = vrot.lane.b32.xlu0 %v188, 104
    %v694 = vpop.permute.xlu0 %693
    %695 = vrot.lane.b32.xlu0 %v227, 104
    %v696 = vpop.permute.xlu0 %695
    %v697 = vsel %vm268, %v694, 0
    %v699 = vsel %vm268, %v696, 0
    %701 = vmatpush.xpose.msra.mxu0 0.0
    %702 = vmatpush.xpose.msra.mxu0 0.0
    %703 = vmatpush.xpose.msra.mxu0 0.0
    %704 = vmatpush.xpose.msra.mxu0 0.0
    %705 = vmatpush.xpose.msra.mxu0 0.0
    %706 = vmatpush.xpose.msra.mxu0 0.0
    %707 = vmatpush.xpose.msra.mxu0 0.0
    %708 = vmatpush.xpose.msra.mxu0 0.0
    %709 = vmatpush.xpose.msra.mxu0 0.0
    %710 = vmatpush.xpose.msra.mxu0 0.0
    %711 = vmatpush.xpose.msra.mxu0 0.0
    %712 = vmatpush.xpose.msra.mxu0 0.0
    %713 = vmatpush.xpose.msra.mxu0 0.0
    %714 = vmatpush.xpose.msra.mxu0 0.0
    %715 = vmatpush.xpose.msra.mxu0 0.0
    %716 = vmatpush.xpose.msra.mxu0 %v699
    %717 = vmatmul.f32.gmra.mxu0 %v697
    %v718 = vpop.f32.mrf.mxu0
    %v719 = vadd.f32 0.0, %v718
    %720 = vdwg.mxu0
    %v721 = vmul.f32 %v691, 0.35355338
    %v722 = vmul.f32 %v719, 0.35355338
    %v723 = vsel %vm268, %v721, -inf
    %724 = vmax.xlane.f32.xlu0 %v723
    %v725 = vpop.xlane.xlu0 %724
    %v726 = vsel %vm268, %v722, -inf
    %727 = vmax.xlane.f32.xlu0 %v726
    %v728 = vpop.xlane.xlu0 %727
    %v729 = vsub.f32 %v721, %v725
    %v730 = vsub.f32 %v722, %v728
    %v731 = vmul.f32 %v729, 1.442695
    %v732 = vpow.pop %v731
    %v733 = vmul.f32 %v730, 1.442695
    %v734 = vpow.pop %v733
    %v735 = vsel %vm268, %v732, 0.0
    %736 = vadd.xlane.f32.xlu0 %v735
    %v737 = vpop.xlane.xlu0 %736
    %v738 = vsel %vm268, %v734, 0.0
    %739 = vadd.xlane.f32.xlu0 %v738
    %v740 = vpop.xlane.xlu0 %739
    %v741 = vrcp.pop %v737
    %v742 = vrcp.pop %v740
    %v743 = vmul.f32 %v732, %v741
    %v744 = vmul.f32 %v734, %v742
    %s745 = scalar_lea.vmem %s12, 48
    %746 = vst.msk [vmem:[%s745] sm:$0xff] %vm268, %v743
    %747 = vst.msk [vmem:[%s745 + $0x8] sm:$0xff] %vm268, %v744
    %748 = vrot.lane.b32.xlu0 %v263, 104
    %v749 = vpop.permute.xlu0 %748
    %v752 = vsel %vm268, %v743, 0
    %754 = vmatpush.msra.mxu0 0.0
    %755 = vmatpush.msra.mxu0 0.0
    %756 = vmatpush.msra.mxu0 0.0
    %757 = vmatpush.msra.mxu0 0.0
    %758 = vmatpush.msra.mxu0 0.0
    %759 = vmatpush.msra.mxu0 0.0
    %760 = vmatpush.msra.mxu0 0.0
    %761 = vmatpush.msra.mxu0 0.0
    %762 = vmatpush.msra.mxu0 0.0
    %763 = vmatpush.msra.mxu0 0.0
    %764 = vmatpush.msra.mxu0 0.0
    %765 = vmatpush.msra.mxu0 0.0
    %766 = vmatpush.msra.mxu0 0.0
    %767 = vmatpush.msra.mxu0 0.0
    %768 = vmatpush.msra.mxu0 0.0
    %769 = vmatpush.msra.mxu0 %v749
    %770 = vmatmul.f32.gmra.mxu0 %v752
    %v771 = vpop.f32.mrf.mxu0
    %v772 = vadd.f32 0.0, %v771
    %773 = vdwg.mxu0
    %774 = vrot.lane.b32.xlu0 %v266, 104
    %v775 = vpop.permute.xlu0 %774
    %v778 = vsel %vm268, %v744, 0
    %780 = vmatpush.msra.mxu0 0.0
    %781 = vmatpush.msra.mxu0 0.0
    %782 = vmatpush.msra.mxu0 0.0
    %783 = vmatpush.msra.mxu0 0.0
    %784 = vmatpush.msra.mxu0 0.0
    %785 = vmatpush.msra.mxu0 0.0
    %786 = vmatpush.msra.mxu0 0.0
    %787 = vmatpush.msra.mxu0 0.0
    %788 = vmatpush.msra.mxu0 0.0
    %789 = vmatpush.msra.mxu0 0.0
    %790 = vmatpush.msra.mxu0 0.0
    %791 = vmatpush.msra.mxu0 0.0
    %792 = vmatpush.msra.mxu0 0.0
    %793 = vmatpush.msra.mxu0 0.0
    %794 = vmatpush.msra.mxu0 0.0
    %795 = vmatpush.msra.mxu0 %v775
    %796 = vmatmul.f32.gmra.mxu0 %v778
    %v797 = vpop.f32.mrf.mxu0
    %v798 = vadd.f32 0.0, %v797
    %799 = vdwg.mxu0
    %802 = vrot.lane.b32.xlu0 %v501, 8
    %v803 = vpop.permute.xlu0 %802
    %804 = vrot.lane.b32.xlu0 %v528, 8
    %v805 = vpop.permute.xlu0 %804
    %810 = vrot.lane.b32.xlu0 %v637, 16
    %v811 = vpop.permute.xlu0 %810
    %812 = vrot.lane.b32.xlu0 %v663, 16
    %v813 = vpop.permute.xlu0 %812
    %818 = vrot.lane.b32.xlu0 %v772, 24
    %v819 = vpop.permute.xlu0 %818
    %820 = vrot.lane.b32.xlu0 %v798, 24
    %v821 = vpop.permute.xlu0 %820
    %v824 = vsel %vm268, %v368, %v803
    %v825 = vsel %vm268, %v391, %v805
    %vm826 = vcmask 130048
    %v827 = vsel %vm826, %v824, %v811
    %v828 = vsel %vm826, %v825, %v813
    %vm829 = vcmask 195584
    %v830 = vsel %vm829, %v827, %v819
    %v831 = vsel %vm829, %v828, %v821
    %v832 = vld [vmem:[#allocation13] sm:$0xff]
    %v833 = vld [vmem:[#allocation13 + $0x8] sm:$0xff]
    %v834 = vld [vmem:[#allocation13 + $0x10] sm:$0xff]
    %v835 = vld [vmem:[#allocation13 + $0x18] sm:$0xff]
    %v836 = vld [vmem:[%s10] sm:$0x1]
    %v838 = vperm.slane %v836, 0
    %v841 = vsel %vm160, %v830, 0
    %v844 = vsel %vm160, %v831, 0
    %846 = vmatpush.msra.mxu0 0.0
    %847 = vmatpush.msra.mxu0 0.0
    %848 = vmatpush.msra.mxu0 0.0
    %849 = vmatpush.msra.mxu0 0.0
    %850 = vmatpush.msra.mxu0 0.0
    %851 = vmatpush.msra.mxu0 0.0
    %852 = vmatpush.msra.mxu0 0.0
    %853 = vmatpush.msra.mxu0 0.0
    %854 = vmatpush.msra.mxu0 0.0
    %855 = vmatpush.msra.mxu0 0.0
    %856 = vmatpush.msra.mxu0 0.0
    %857 = vmatpush.msra.mxu0 0.0
    %858 = vmatpush.msra.mxu0 %v835
    %859 = vmatpush.msra.mxu0 %v834
    %860 = vmatpush.msra.mxu0 %v833
    %861 = vmatpush.msra.mxu0 %v832
    %862 = vmatmul.f32.gmra.mxu0 %v841
    %v863 = vpop.f32.mrf.mxu0
    %v864 = vadd.f32 %v838, %v863
    %865 = vmatmul.f32.gmra.mxu0 %v844
    %v866 = vpop.f32.mrf.mxu0
    %v867 = vadd.f32 %v838, %v866
    %868 = vdwg.mxu0
    %869 = vst.msk [vmem:[#allocation14] sm:$0xff] %vm160, %v864
    %870 = vst.msk [vmem:[#allocation14 + $0x8] sm:$0xff] %vm160, %v867
    // Predicated region
    $region74: #{multihead_attention.1} parent=1 // pred_check
      _
    $region75: #{multihead_attention.1} parent=1 // pred_check_branch
      %872 = sbr.rel (0) target = $region77
    $region76: #{multihead_attention.1} parent=1 // pred_region
      %874 = vsyncadd [#allocation4], 0
      %s875 = sshll.u32 [#allocation14], 4
      %s876 = int_to_ptr.vmem [resolvable:$true] %s875
      %s877 = sshll.u32 %s11, 4
      %s878 = int_to_ptr.hbm [resolvable:$true] %s877
      %883 = dma.vmem_to_hbm [thread:$0]  %s876, 256, %s878, [#allocation4], 128, 128, 8
    $region77: #{multihead_attention.1} parent=1 // pred_fallthru
      _
    // Predicated region
    $region78: #{multihead_attention.1} parent=1 // pred_check
      _
    $region79: #{multihead_attention.1} parent=1 // pred_check_branch
      %885 = sbr.rel (0) target = $region81
    $region80: #{multihead_attention.1} parent=1 // pred_region
      _
    $region81: #{multihead_attention.1} parent=1 // pred_fallthru
      _
    // Predicated region
    $region82: #{multihead_attention.1} parent=1 // pred_check
      _
    $region83: #{multihead_attention.1} parent=1 // pred_check_branch
      %887 = sbr.rel (0) target = $region85
    $region84: #{multihead_attention.1} parent=1 // pred_region
      %889 = dma.done [#allocation4], 256
    $region85: #{multihead_attention.1} parent=1 // pred_fallthru
      _
    // Predicated region
    $region86: #{multihead_attention.1} parent=1 // pred_check
      _
    $region87: #{multihead_attention.1} parent=1 // pred_check_branch
      %891 = sbr.rel (0) target = $region89
    $region88: #{multihead_attention.1} parent=1 // pred_region
      _
    $region89: #{multihead_attention.1} parent=1 // pred_fallthru
      _
    %892 = vsyncpa [#allocation3], 1
    %893 = vsyncpa [#allocation6], 1
    %894 = vsyncpa [#allocation9], 1
    %895 = vsyncpa [#allocation12], 1
    %896 = vsyncpa [#allocation4], 1

</llo_original>
